<compile_context>
chip_gen: v6e
topology: v6e:2x2x1
jax: 0.10.0
libtpu: 0.0.40
codegen_flags: <defaults>
</compile_context>

<pallas_src>
import functools

import jax
import jax.numpy as jnp
import numpy as np
from jax.experimental import pallas as pl
from jax.experimental.pallas import tpu as pltpu


def relukan_layer_kernel(x_ref, plo_ref, phi_ref, w_ref, b_ref, out_ref, slab_ref, *, r):
    """One batch tile of a ReLUKANLayer.

    x_ref    : (TB, IN)          input tile
    plo_ref  : (G+K, IN)         phase_low.T
    phi_ref  : (G+K, IN)         phase_height.T
    w_ref    : ((G+K)*IN, OUT)   conv weight flattened so row j*IN+i multiplies basis(i, j)
    b_ref    : (1, OUT)          conv bias
    out_ref  : (TB, OUT)
    slab_ref : (TB, (G+K)*IN)    VMEM scratch holding the flattened basis slab
    """
    x = x_ref[...]                                    # (TB, IN) f32
    gk, in_f = plo_ref.shape
    for j in range(gk):                               # g+k chunks, each lane-dense over IN
        lo = plo_ref[j:j + 1, :]                      # (1, IN) broadcasts over batch
        hi = phi_ref[j:j + 1, :]
        y = jnp.maximum(x - lo, 0.0) * jnp.maximum(hi - x, 0.0) * r
        slab_ref[:, j * in_f:(j + 1) * in_f] = y * y
    acc = jnp.dot(slab_ref[...], w_ref[...], preferred_element_type=jnp.float32)
    out_ref[...] = (acc + b_ref[...]).astype(out_ref.dtype)


def relukan_layer_forward(x, phase_low_t, phase_high_t, w_mat, bias, *, r, block_batch=128):
    """x: (B, IN) -> (B, OUT). Weights already in kernel layout (see layer_kernel_weights)."""
    B, IN = x.shape
    GK = phase_low_t.shape[0]
    KDIM = GK * IN
    OUT = w_mat.shape[1]
    assert w_mat.shape[0] == KDIM

    tb = min(block_batch, max(8, B))
    tb = max(8, (tb // 8) * 8)                        # sublane-aligned batch tile (f32)
    Bp = pl.cdiv(B, tb) * tb
    if Bp != B:
        x = jnp.pad(x, ((0, Bp - B), (0, 0)))

    bias2d = bias.reshape(1, OUT)
    kernel = functools.partial(relukan_layer_kernel, r=r)

    flops = 2 * Bp * KDIM * OUT + 6 * Bp * KDIM
    bytes_accessed = 4 * (Bp * IN + 2 * KDIM + KDIM * OUT + OUT + Bp * OUT)

    out = pl.pallas_call(
        kernel,
        out_shape=jax.ShapeDtypeStruct((Bp, OUT), x.dtype),
        grid=(Bp // tb,),
        in_specs=[
            pl.BlockSpec((tb, IN), lambda i: (i, 0)),
            pl.BlockSpec((GK, IN), lambda i: (0, 0)),
            pl.BlockSpec((GK, IN), lambda i: (0, 0)),
            pl.BlockSpec((KDIM, OUT), lambda i: (0, 0)),
            pl.BlockSpec((1, OUT), lambda i: (0, 0)),
        ],
        out_specs=pl.BlockSpec((tb, OUT), lambda i: (i, 0)),
        scratch_shapes=[pltpu.VMEM((tb, KDIM), jnp.float32)],
        compiler_params=pltpu.CompilerParams(dimension_semantics=("parallel",)),
        cost_estimate=pl.CostEstimate(flops=flops, transcendentals=0,
                                      bytes_accessed=bytes_accessed),
    )(x, phase_low_t, phase_high_t, w_mat, bias2d)
    return out[:B]


def make_relukan_params(key, in_dim, out_dim, hidden_list, grid=5, k=3):
    """Deterministic params mirroring ReLUKAN.__init__ (including the hard-coded lastv=9:
    the first layer's input size is 9 regardless of in_dim, exactly as in the torch code)."""
    gk = grid + k
    sizes = []
    lastv = 9
    for hidden in hidden_list:
        sizes.append((lastv, hidden))
        lastv = hidden
    sizes.append((lastv, out_dim))

    phase_low_1d = np.arange(-k, grid, dtype=np.float32) / grid       # (g+k,)
    phase_high_1d = phase_low_1d + (k + 1) / grid

    layers = []
    for (isz, osz) in sizes:
        key, kw, kb = jax.random.split(key, 3)
        fan_in = 1 * gk * isz
        bound = 1.0 / np.sqrt(fan_in)                 # matches Conv2d kaiming_uniform(a=sqrt(5)) bound
        conv_w = jax.random.uniform(kw, (osz, 1, gk, isz), jnp.float32, -bound, bound)
        conv_b = jax.random.uniform(kb, (osz,), jnp.float32, -bound, bound)
        phase_low = jnp.broadcast_to(jnp.asarray(phase_low_1d), (isz, gk))
        phase_high = jnp.broadcast_to(jnp.asarray(phase_high_1d), (isz, gk))
        layers.append(dict(phase_low=phase_low, phase_high=phase_high,
                           conv_w=conv_w, conv_b=conv_b, in_size=isz, out_size=osz))
    return layers


def layer_kernel_weights(layer, grid, k):
    """Fold the Conv2d(1, OUT, (g+k, IN)) into a dense matrix in the kernel's slab order.

    The torch forward reshapes the (B, IN, G+K) basis flat to (B, 1, G+K, IN), so
    conv_w[o, 0, p, q] multiplies flat basis index p*IN + q == i*(G+K) + j, i.e.
    conv_w.reshape(OUT, IN, G+K)[o, i, j] is the weight of basis(i, j).  The kernel's
    slab stores basis(i, j) at column j*IN + i, hence the transpose below.
    """
    gk = grid + k
    isz, osz = layer["in_size"], layer["out_size"]
    w_pb = layer["conv_w"].reshape(osz, isz, gk)                       # (OUT, IN, GK)
    w_mat = jnp.transpose(w_pb, (2, 1, 0)).reshape(gk * isz, osz)      # row j*IN + i
    return (layer["phase_low"].T, layer["phase_high"].T, w_mat, layer["conv_b"])


def relukan_forward(x, layers, grid, k, block_batch=128):
    """Mirrors ReLUKAN.forward: view(*shape, -1) -> chained ReLUKANLayers -> view(*shape, -1)."""
    r = 4.0 * grid * grid / ((k + 1) ** 2)
    shape = x.shape[:-1]
    xv = x.reshape(shape + (-1,))                     # x.view(*shape, -1)
    h = xv.reshape(xv.shape[0], -1)                   # (batch, 9); trailing 1 squeezed
    for layer in layers:
        plo_t, phi_t, w_mat, bias = layer_kernel_weights(layer, grid, k)
        h = relukan_layer_forward(h, plo_t, phi_t, w_mat, bias, r=r, block_batch=block_batch)
    return h.reshape(shape + (-1,))                   # final x.view(*shape, -1)


# ---------------- pure-JAX reference (exact mirror of the torch math) ----------------

def relukan_layer_ref(x2d, phase_low, phase_high, conv_w, conv_b, grid, k):
    r = 4.0 * grid * grid / ((k + 1) ** 2)
    gk = grid + k
    B, IN = x2d.shape
    x = x2d[:, :, None]                               # (B, IN, 1), same broadcast as torch
    x1 = jnp.maximum(x - phase_low, 0.0)              # (B, IN, GK)
    x2 = jnp.maximum(phase_high - x, 0.0)
    y = x1 * x2 * r
    y = y * y
    yr = y.reshape(B, 1, gk, IN)                      # torch's flat (axis-mixing) reshape
    out = jnp.einsum("bcpq,ocpq->bo", yr, conv_w) + conv_b
    return out                                        # (B, OUT) == torch (B, OUT, 1) squeezed


def relukan_forward_ref(x, layers, grid, k):
    shape = x.shape[:-1]
    xv = x.reshape(shape + (-1,))
    h = xv.reshape(xv.shape[0], -1)
    for layer in layers:
        h = relukan_layer_ref(h, layer["phase_low"], layer["phase_high"],
                              layer["conv_w"], layer["conv_b"], grid, k)
    return h.reshape(shape + (-1,))


if __name__ == "__main__":
    grid, k = 5, 3
    in_dim, out_dim = 9, 9        # first-layer input is hard-coded to 9 in the torch module
    hidden_list = [32]
    batch = 16

    key = jax.random.PRNGKey(0)
    key, kx = jax.random.split(key)
    layers = make_relukan_params(key, in_dim, out_dim, hidden_list, grid=grid, k=k)
    # Valid torch input shape for this module is (batch, 9, 1).
    x = jax.random.uniform(kx, (batch, 9, 1), jnp.float32, 0.0, 1.0)

    out = relukan_forward(x, layers, grid, k, block_batch=128)
    out = jax.block_until_ready(out)

    ref = relukan_forward_ref(x, layers, grid, k)
    np.testing.assert_allclose(np.asarray(out), np.asarray(ref), rtol=1e-5, atol=1e-6)

    # TODO(synk): bf16 matmul operands (keep f32 accumulation / f32 basis math) are worthwhile
    # on v6e/v7x at production sizes; kept f32 here so the small-shape check stays tight.
    print("KERNEL_OK")
</pallas_src>

<mosaic_0001>
module attributes {stable_mosaic.version = 11 : i64} {
  func.func @relukan_layer_kernel(%arg0: i32, %arg1: memref<16x9xf32, #tpu.memory_space<vmem>>, %arg2: memref<8x9xf32, #tpu.memory_space<vmem>>, %arg3: memref<8x9xf32, #tpu.memory_space<vmem>>, %arg4: memref<72x32xf32, #tpu.memory_space<vmem>>, %arg5: memref<1x32xf32, #tpu.memory_space<vmem>>, %arg6: memref<16x32xf32, #tpu.memory_space<vmem>>, %arg7: memref<16x72xf32, #tpu.memory_space<vmem>>) attributes {dimension_semantics = [#tpu.dimension_semantics<parallel>], iteration_bounds = array<i64: 1>, scalar_prefetch = 0 : i64, scratch_operands = 1 : i64, tpu.core_type = #tpu.core_type<tc>, window_params = [{transform_indices = @transform_0, window_bounds = array<i64: 16, 9>}, {pipeline_mode = #tpu.pipeline_mode<synchronous>, transform_indices = @transform_1, window_bounds = array<i64: 8, 9>}, {pipeline_mode = #tpu.pipeline_mode<synchronous>, transform_indices = @transform_2, window_bounds = array<i64: 8, 9>}, {pipeline_mode = #tpu.pipeline_mode<synchronous>, transform_indices = @transform_3, window_bounds = array<i64: 72, 32>}, {pipeline_mode = #tpu.pipeline_mode<synchronous>, transform_indices = @transform_4, window_bounds = array<i64: 1, 32>}, {transform_indices = @transform_5, window_bounds = array<i64: 16, 32>}]} {
    %c0 = arith.constant 0 : index
    %c0_0 = arith.constant 0 : index
    %0 = vector.load %arg1[%c0, %c0_0] : memref<16x9xf32, #tpu.memory_space<vmem>>, vector<16x9xf32>
    %c0_1 = arith.constant 0 : index
    %c0_2 = arith.constant 0 : index
    %1 = vector.load %arg2[%c0_1, %c0_2] : memref<8x9xf32, #tpu.memory_space<vmem>>, vector<1x9xf32>
    %c0_3 = arith.constant 0 : index
    %c0_4 = arith.constant 0 : index
    %2 = vector.load %arg3[%c0_3, %c0_4] : memref<8x9xf32, #tpu.memory_space<vmem>>, vector<1x9xf32>
    %3 = vector.broadcast %1 : vector<1x9xf32> to vector<16x9xf32>
    %4 = arith.subf %0, %3 : vector<16x9xf32>
    %cst = arith.constant 0.000000e+00 : f32
    %5 = vector.broadcast %cst : f32 to vector<16x9xf32>
    %6 = arith.maximumf %4, %5 : vector<16x9xf32>
    %7 = vector.broadcast %2 : vector<1x9xf32> to vector<16x9xf32>
    %8 = arith.subf %7, %0 : vector<16x9xf32>
    %cst_5 = arith.constant 0.000000e+00 : f32
    %9 = vector.broadcast %cst_5 : f32 to vector<16x9xf32>
    %10 = arith.maximumf %8, %9 : vector<16x9xf32>
    %11 = arith.mulf %6, %10 : vector<16x9xf32>
    %cst_6 = arith.constant 6.250000e+00 : f32
    %12 = vector.broadcast %cst_6 : f32 to vector<16x9xf32>
    %13 = arith.mulf %11, %12 : vector<16x9xf32>
    %14 = arith.mulf %13, %13 : vector<16x9xf32>
    %c0_7 = arith.constant 0 : index
    %c0_8 = arith.constant 0 : index
    %15 = vector.load %arg7[%c0_7, %c0_8] : memref<16x72xf32, #tpu.memory_space<vmem>>, vector<16x9xf32>
    tpu.vector_store %arg7[%c0_7, %c0_8], %14 {strides = array<i32>} : memref<16x72xf32, #tpu.memory_space<vmem>>, vector<16x9xf32>,
    %c1 = arith.constant 1 : index
    %c0_9 = arith.constant 0 : index
    %16 = vector.load %arg2[%c1, %c0_9] : memref<8x9xf32, #tpu.memory_space<vmem>>, vector<1x9xf32>
    %c1_10 = arith.constant 1 : index
    %c0_11 = arith.constant 0 : index
    %17 = vector.load %arg3[%c1_10, %c0_11] : memref<8x9xf32, #tpu.memory_space<vmem>>, vector<1x9xf32>
    %18 = vector.broadcast %16 : vector<1x9xf32> to vector<16x9xf32>
    %19 = arith.subf %0, %18 : vector<16x9xf32>
    %cst_12 = arith.constant 0.000000e+00 : f32
    %20 = vector.broadcast %cst_12 : f32 to vector<16x9xf32>
    %21 = arith.maximumf %19, %20 : vector<16x9xf32>
    %22 = vector.broadcast %17 : vector<1x9xf32> to vector<16x9xf32>
    %23 = arith.subf %22, %0 : vector<16x9xf32>
    %cst_13 = arith.constant 0.000000e+00 : f32
    %24 = vector.broadcast %cst_13 : f32 to vector<16x9xf32>
    %25 = arith.maximumf %23, %24 : vector<16x9xf32>
    %26 = arith.mulf %21, %25 : vector<16x9xf32>
    %cst_14 = arith.constant 6.250000e+00 : f32
    %27 = vector.broadcast %cst_14 : f32 to vector<16x9xf32>
    %28 = arith.mulf %26, %27 : vector<16x9xf32>
    %29 = arith.mulf %28, %28 : vector<16x9xf32>
    %c0_15 = arith.constant 0 : index
    %c9 = arith.constant 9 : index
    %30 = vector.load %arg7[%c0_15, %c9] : memref<16x72xf32, #tpu.memory_space<vmem>>, vector<16x9xf32>
    tpu.vector_store %arg7[%c0_15, %c9], %29 {strides = array<i32>} : memref<16x72xf32, #tpu.memory_space<vmem>>, vector<16x9xf32>,
    %c2 = arith.constant 2 : index
    %c0_16 = arith.constant 0 : index
    %31 = vector.load %arg2[%c2, %c0_16] : memref<8x9xf32, #tpu.memory_space<vmem>>, vector<1x9xf32>
    %c2_17 = arith.constant 2 : index
    %c0_18 = arith.constant 0 : index
    %32 = vector.load %arg3[%c2_17, %c0_18] : memref<8x9xf32, #tpu.memory_space<vmem>>, vector<1x9xf32>
    %33 = vector.broadcast %31 : vector<1x9xf32> to vector<16x9xf32>
    %34 = arith.subf %0, %33 : vector<16x9xf32>
    %cst_19 = arith.constant 0.000000e+00 : f32
    %35 = vector.broadcast %cst_19 : f32 to vector<16x9xf32>
    %36 = arith.maximumf %34, %35 : vector<16x9xf32>
    %37 = vector.broadcast %32 : vector<1x9xf32> to vector<16x9xf32>
    %38 = arith.subf %37, %0 : vector<16x9xf32>
    %cst_20 = arith.constant 0.000000e+00 : f32
    %39 = vector.broadcast %cst_20 : f32 to vector<16x9xf32>
    %40 = arith.maximumf %38, %39 : vector<16x9xf32>
    %41 = arith.mulf %36, %40 : vector<16x9xf32>
    %cst_21 = arith.constant 6.250000e+00 : f32
    %42 = vector.broadcast %cst_21 : f32 to vector<16x9xf32>
    %43 = arith.mulf %41, %42 : vector<16x9xf32>
    %44 = arith.mulf %43, %43 : vector<16x9xf32>
    %c0_22 = arith.constant 0 : index
    %c18 = arith.constant 18 : index
    %45 = vector.load %arg7[%c0_22, %c18] : memref<16x72xf32, #tpu.memory_space<vmem>>, vector<16x9xf32>
    tpu.vector_store %arg7[%c0_22, %c18], %44 {strides = array<i32>} : memref<16x72xf32, #tpu.memory_space<vmem>>, vector<16x9xf32>,
    %c3 = arith.constant 3 : index
    %c0_23 = arith.constant 0 : index
    %46 = vector.load %arg2[%c3, %c0_23] : memref<8x9xf32, #tpu.memory_space<vmem>>, vector<1x9xf32>
    %c3_24 = arith.constant 3 : index
    %c0_25 = arith.constant 0 : index
    %47 = vector.load %arg3[%c3_24, %c0_25] : memref<8x9xf32, #tpu.memory_space<vmem>>, vector<1x9xf32>
    %48 = vector.broadcast %46 : vector<1x9xf32> to vector<16x9xf32>
    %49 = arith.subf %0, %48 : vector<16x9xf32>
    %cst_26 = arith.constant 0.000000e+00 : f32
    %50 = vector.broadcast %cst_26 : f32 to vector<16x9xf32>
    %51 = arith.maximumf %49, %50 : vector<16x9xf32>
    %52 = vector.broadcast %47 : vector<1x9xf32> to vector<16x9xf32>
    %53 = arith.subf %52, %0 : vector<16x9xf32>
    %cst_27 = arith.constant 0.000000e+00 : f32
    %54 = vector.broadcast %cst_27 : f32 to vector<16x9xf32>
    %55 = arith.maximumf %53, %54 : vector<16x9xf32>
    %56 = arith.mulf %51, %55 : vector<16x9xf32>
    %cst_28 = arith.constant 6.250000e+00 : f32
    %57 = vector.broadcast %cst_28 : f32 to vector<16x9xf32>
    %58 = arith.mulf %56, %57 : vector<16x9xf32>
    %59 = arith.mulf %58, %58 : vector<16x9xf32>
    %c0_29 = arith.constant 0 : index
    %c27 = arith.constant 27 : index
    %60 = vector.load %arg7[%c0_29, %c27] : memref<16x72xf32, #tpu.memory_space<vmem>>, vector<16x9xf32>
    tpu.vector_store %arg7[%c0_29, %c27], %59 {strides = array<i32>} : memref<16x72xf32, #tpu.memory_space<vmem>>, vector<16x9xf32>,
    %c4 = arith.constant 4 : index
    %c0_30 = arith.constant 0 : index
    %61 = vector.load %arg2[%c4, %c0_30] : memref<8x9xf32, #tpu.memory_space<vmem>>, vector<1x9xf32>
    %c4_31 = arith.constant 4 : index
    %c0_32 = arith.constant 0 : index
    %62 = vector.load %arg3[%c4_31, %c0_32] : memref<8x9xf32, #tpu.memory_space<vmem>>, vector<1x9xf32>
    %63 = vector.broadcast %61 : vector<1x9xf32> to vector<16x9xf32>
    %64 = arith.subf %0, %63 : vector<16x9xf32>
    %cst_33 = arith.constant 0.000000e+00 : f32
    %65 = vector.broadcast %cst_33 : f32 to vector<16x9xf32>
    %66 = arith.maximumf %64, %65 : vector<16x9xf32>
    %67 = vector.broadcast %62 : vector<1x9xf32> to vector<16x9xf32>
    %68 = arith.subf %67, %0 : vector<16x9xf32>
    %cst_34 = arith.constant 0.000000e+00 : f32
    %69 = vector.broadcast %cst_34 : f32 to vector<16x9xf32>
    %70 = arith.maximumf %68, %69 : vector<16x9xf32>
    %71 = arith.mulf %66, %70 : vector<16x9xf32>
    %cst_35 = arith.constant 6.250000e+00 : f32
    %72 = vector.broadcast %cst_35 : f32 to vector<16x9xf32>
    %73 = arith.mulf %71, %72 : vector<16x9xf32>
    %74 = arith.mulf %73, %73 : vector<16x9xf32>
    %c0_36 = arith.constant 0 : index
    %c36 = arith.constant 36 : index
    %75 = vector.load %arg7[%c0_36, %c36] : memref<16x72xf32, #tpu.memory_space<vmem>>, vector<16x9xf32>
    tpu.vector_store %arg7[%c0_36, %c36], %74 {strides = array<i32>} : memref<16x72xf32, #tpu.memory_space<vmem>>, vector<16x9xf32>,
    %c5 = arith.constant 5 : index
    %c0_37 = arith.constant 0 : index
    %76 = vector.load %arg2[%c5, %c0_37] : memref<8x9xf32, #tpu.memory_space<vmem>>, vector<1x9xf32>
    %c5_38 = arith.constant 5 : index
    %c0_39 = arith.constant 0 : index
    %77 = vector.load %arg3[%c5_38, %c0_39] : memref<8x9xf32, #tpu.memory_space<vmem>>, vector<1x9xf32>
    %78 = vector.broadcast %76 : vector<1x9xf32> to vector<16x9xf32>
    %79 = arith.subf %0, %78 : vector<16x9xf32>
    %cst_40 = arith.constant 0.000000e+00 : f32
    %80 = vector.broadcast %cst_40 : f32 to vector<16x9xf32>
    %81 = arith.maximumf %79, %80 : vector<16x9xf32>
    %82 = vector.broadcast %77 : vector<1x9xf32> to vector<16x9xf32>
    %83 = arith.subf %82, %0 : vector<16x9xf32>
    %cst_41 = arith.constant 0.000000e+00 : f32
    %84 = vector.broadcast %cst_41 : f32 to vector<16x9xf32>
    %85 = arith.maximumf %83, %84 : vector<16x9xf32>
    %86 = arith.mulf %81, %85 : vector<16x9xf32>
    %cst_42 = arith.constant 6.250000e+00 : f32
    %87 = vector.broadcast %cst_42 : f32 to vector<16x9xf32>
    %88 = arith.mulf %86, %87 : vector<16x9xf32>
    %89 = arith.mulf %88, %88 : vector<16x9xf32>
    %c0_43 = arith.constant 0 : index
    %c45 = arith.constant 45 : index
    %90 = vector.load %arg7[%c0_43, %c45] : memref<16x72xf32, #tpu.memory_space<vmem>>, vector<16x9xf32>
    tpu.vector_store %arg7[%c0_43, %c45], %89 {strides = array<i32>} : memref<16x72xf32, #tpu.memory_space<vmem>>, vector<16x9xf32>,
    %c6 = arith.constant 6 : index
    %c0_44 = arith.constant 0 : index
    %91 = vector.load %arg2[%c6, %c0_44] : memref<8x9xf32, #tpu.memory_space<vmem>>, vector<1x9xf32>
    %c6_45 = arith.constant 6 : index
    %c0_46 = arith.constant 0 : index
    %92 = vector.load %arg3[%c6_45, %c0_46] : memref<8x9xf32, #tpu.memory_space<vmem>>, vector<1x9xf32>
    %93 = vector.broadcast %91 : vector<1x9xf32> to vector<16x9xf32>
    %94 = arith.subf %0, %93 : vector<16x9xf32>
    %cst_47 = arith.constant 0.000000e+00 : f32
    %95 = vector.broadcast %cst_47 : f32 to vector<16x9xf32>
    %96 = arith.maximumf %94, %95 : vector<16x9xf32>
    %97 = vector.broadcast %92 : vector<1x9xf32> to vector<16x9xf32>
    %98 = arith.subf %97, %0 : vector<16x9xf32>
    %cst_48 = arith.constant 0.000000e+00 : f32
    %99 = vector.broadcast %cst_48 : f32 to vector<16x9xf32>
    %100 = arith.maximumf %98, %99 : vector<16x9xf32>
    %101 = arith.mulf %96, %100 : vector<16x9xf32>
    %cst_49 = arith.constant 6.250000e+00 : f32
    %102 = vector.broadcast %cst_49 : f32 to vector<16x9xf32>
    %103 = arith.mulf %101, %102 : vector<16x9xf32>
    %104 = arith.mulf %103, %103 : vector<16x9xf32>
    %c0_50 = arith.constant 0 : index
    %c54 = arith.constant 54 : index
    %105 = vector.load %arg7[%c0_50, %c54] : memref<16x72xf32, #tpu.memory_space<vmem>>, vector<16x9xf32>
    tpu.vector_store %arg7[%c0_50, %c54], %104 {strides = array<i32>} : memref<16x72xf32, #tpu.memory_space<vmem>>, vector<16x9xf32>,
    %c7 = arith.constant 7 : index
    %c0_51 = arith.constant 0 : index
    %106 = vector.load %arg2[%c7, %c0_51] : memref<8x9xf32, #tpu.memory_space<vmem>>, vector<1x9xf32>
    %c7_52 = arith.constant 7 : index
    %c0_53 = arith.constant 0 : index
    %107 = vector.load %arg3[%c7_52, %c0_53] : memref<8x9xf32, #tpu.memory_space<vmem>>, vector<1x9xf32>
    %108 = vector.broadcast %106 : vector<1x9xf32> to vector<16x9xf32>
    %109 = arith.subf %0, %108 : vector<16x9xf32>
    %cst_54 = arith.constant 0.000000e+00 : f32
    %110 = vector.broadcast %cst_54 : f32 to vector<16x9xf32>
    %111 = arith.maximumf %109, %110 : vector<16x9xf32>
    %112 = vector.broadcast %107 : vector<1x9xf32> to vector<16x9xf32>
    %113 = arith.subf %112, %0 : vector<16x9xf32>
    %cst_55 = arith.constant 0.000000e+00 : f32
    %114 = vector.broadcast %cst_55 : f32 to vector<16x9xf32>
    %115 = arith.maximumf %113, %114 : vector<16x9xf32>
    %116 = arith.mulf %111, %115 : vector<16x9xf32>
    %cst_56 = arith.constant 6.250000e+00 : f32
    %117 = vector.broadcast %cst_56 : f32 to vector<16x9xf32>
    %118 = arith.mulf %116, %117 : vector<16x9xf32>
    %119 = arith.mulf %118, %118 : vector<16x9xf32>
    %c0_57 = arith.constant 0 : index
    %c63 = arith.constant 63 : index
    %120 = vector.load %arg7[%c0_57, %c63] : memref<16x72xf32, #tpu.memory_space<vmem>>, vector<16x9xf32>
    tpu.vector_store %arg7[%c0_57, %c63], %119 {strides = array<i32>} : memref<16x72xf32, #tpu.memory_space<vmem>>, vector<16x9xf32>,
    %c0_58 = arith.constant 0 : index
    %c0_59 = arith.constant 0 : index
    %121 = vector.load %arg7[%c0_58, %c0_59] : memref<16x72xf32, #tpu.memory_space<vmem>>, vector<16x72xf32>
    %c0_60 = arith.constant 0 : index
    %c0_61 = arith.constant 0 : index
    %122 = vector.load %arg4[%c0_60, %c0_61] : memref<72x32xf32, #tpu.memory_space<vmem>>, vector<72x32xf32>
    %cst_62 = arith.constant dense<0.000000e+00> : vector<16x32xf32>
    %123 = tpu.matmul %121, %122, %cst_62 {dimension_numbers = #tpu.dot_dimension_numbers<[1], [0], [0], [1], [0, 0, 1, 1], [], []>} : vector<16x72xf32>, vector<72x32xf32>, vector<16x32xf32> -> vector<16x32xf32>
    %c0_63 = arith.constant 0 : index
    %c0_64 = arith.constant 0 : index
    %124 = vector.load %arg5[%c0_63, %c0_64] : memref<1x32xf32, #tpu.memory_space<vmem>>, vector<1x32xf32>
    %125 = vector.broadcast %124 : vector<1x32xf32> to vector<16x32xf32>
    %126 = arith.addf %123, %125 : vector<16x32xf32>
    %c0_65 = arith.constant 0 : index
    %c0_66 = arith.constant 0 : index
    %127 = vector.load %arg6[%c0_65, %c0_66] : memref<16x32xf32, #tpu.memory_space<vmem>>, vector<16x32xf32>
    tpu.vector_store %arg6[%c0_65, %c0_66], %126 {strides = array<i32>} : memref<16x32xf32, #tpu.memory_space<vmem>>, vector<16x32xf32>,
    return
  }
  func.func @transform_0(%arg0: i32) -> (i32, i32) {
    %c0_i32 = arith.constant 0 : i32
    %c0_i32_0 = arith.constant 0 : i32
    return %arg0, %c0_i32 : i32, i32
  }
  func.func @transform_1(%arg0: i32) -> (i32, i32) {
    %c0_i32 = arith.constant 0 : i32
    %c0_i32_0 = arith.constant 0 : i32
    %c0_i32_1 = arith.constant 0 : i32
    return %c0_i32, %c0_i32_0 : i32, i32
  }
  func.func @transform_2(%arg0: i32) -> (i32, i32) {
    %c0_i32 = arith.constant 0 : i32
    %c0_i32_0 = arith.constant 0 : i32
    %c0_i32_1 = arith.constant 0 : i32
    return %c0_i32, %c0_i32_0 : i32, i32
  }
  func.func @transform_3(%arg0: i32) -> (i32, i32) {
    %c0_i32 = arith.constant 0 : i32
    %c0_i32_0 = arith.constant 0 : i32
    %c0_i32_1 = arith.constant 0 : i32
    return %c0_i32, %c0_i32_0 : i32, i32
  }
  func.func @transform_4(%arg0: i32) -> (i32, i32) {
    %c0_i32 = arith.constant 0 : i32
    %c0_i32_0 = arith.constant 0 : i32
    %c0_i32_1 = arith.constant 0 : i32
    return %c0_i32, %c0_i32_0 : i32, i32
  }
  func.func @transform_5(%arg0: i32) -> (i32, i32) {
    %c0_i32 = arith.constant 0 : i32
    %c0_i32_0 = arith.constant 0 : i32
    return %arg0, %c0_i32 : i32, i32
  }
}

</mosaic_0001>

<llo_original>
// kernel: tpu_custom_call.1
$region0: #{tpu_custom_call.1}
  #allocation0 [shape = 'u32[]', space=smem, size = 0x4, offset = 0x4, fixed_abs, tag = 'smem constant byte address 0x4 - core index']
  #allocation1 [shape = 'u32[144,128]{1,0:T(1,128)}', space=vmem, size = 0x12000, scoped, tag = 'internal scratch']
  #allocation2 [shape = 'f32[16,72]{1,0:T(8,128)}', space=vmem, size = 0x2000, scoped, tag = 'scratch operand']
  %s0 = inlined_call_operand.vmem [shape: f32[16,9], index: 0, kind: input, shape index: {}]
  %s1 = inlined_call_operand.vmem [shape: f32[8,9], index: 1, kind: input, shape index: {}]
  %s2 = inlined_call_operand.vmem [shape: f32[8,9], index: 2, kind: input, shape index: {}]
  %s3 = inlined_call_operand.vmem [shape: f32[72,32], index: 3, kind: input, shape index: {}]
  %s4 = inlined_call_operand.vmem [shape: f32[1,32], index: 4, kind: input, shape index: {}]
  %s5 = inlined_call_operand.hbm [shape: f32[16,32], index: 5, kind: output, shape index: {}]
  %s6 = sld [smem:[#allocation0]]
  $region30: #{tpu_custom_call.1} parent=0
    _
  %s8 = ssub.s32 1, %s6
  %s9 = scalar_select 0, %s8, %s6
  $region1: #{tpu_custom_call.1} parent=0
    #allocation3 [shape = 'u8[8192]{0}', space=vmem, size = 0x2000, scoped, tag = 'output window, operand 0, single buffered']
    #allocation4 [shape = 's32[1]{0}', space=sflag, size = 0x4, scoped, tag = 'scoped memory for tpu_custom_call.1']
    %10 = vsyncpa [#allocation4], 0
    // Predicated region
    $region2: #{tpu_custom_call.1} parent=1 // pred_check
      _
    $region3: #{tpu_custom_call.1} parent=1 // pred_check_branch
      %12 = sbr.rel (0) target = $region5
    $region4: #{tpu_custom_call.1} parent=1 // pred_region
      _
    $region5: #{tpu_custom_call.1} parent=1 // pred_fallthru
      _
    // Predicated region
    $region6: #{tpu_custom_call.1} parent=1 // pred_check
      _
    $region7: #{tpu_custom_call.1} parent=1 // pred_check_branch
      %14 = sbr.rel (0) target = $region9
    $region8: #{tpu_custom_call.1} parent=1 // pred_region
      _
    $region9: #{tpu_custom_call.1} parent=1 // pred_fallthru
      _
    // Predicated region
    $region10: #{tpu_custom_call.1} parent=1 // pred_check
      _
    $region11: #{tpu_custom_call.1} parent=1 // pred_check_branch
      %16 = sbr.rel (0) target = $region13
    $region12: #{tpu_custom_call.1} parent=1 // pred_region
      _
    $region13: #{tpu_custom_call.1} parent=1 // pred_fallthru
      _
    // Predicated region
    $region14: #{tpu_custom_call.1} parent=1 // pred_check
      _
    $region15: #{tpu_custom_call.1} parent=1 // pred_check_branch
      %18 = sbr.rel (0) target = $region17
    $region16: #{tpu_custom_call.1} parent=1 // pred_region
      _
    $region17: #{tpu_custom_call.1} parent=1 // pred_fallthru
      _
    // Predicated region
    $region18: #{tpu_custom_call.1} parent=1 // pred_check
      _
    $region19: #{tpu_custom_call.1} parent=1 // pred_check_branch
      %20 = sbr.rel (0) target = $region21
    $region20: #{tpu_custom_call.1} parent=1 // pred_region
      _
    $region21: #{tpu_custom_call.1} parent=1 // pred_fallthru
      _
    %v21 = vld [vmem:[%s0] sm:$0xff]
    %v22 = vld [vmem:[%s0 + $0x8] sm:$0xff]
    %v23 = vld [vmem:[%s1] sm:$0x1]
    %v24 = vld [vmem:[%s2] sm:$0x1]
    %v25 = vlaneseq
    %v26 = vshrl.u32 %v25, 7
    %v27 = vsub.s32 0, %v26
    %v28 = vrot.slane %v23, %v27
    %v29 = vsub.f32 %v21, %v28
    %v30 = vsub.f32 %v22, %v28
    %v31 = vmax.f32 %v29, 0.0
    %v32 = vmax.f32 %v30, 0.0
    %v33 = vlaneseq
    %v34 = vshrl.u32 %v33, 7
    %v35 = vsub.s32 0, %v34
    %v36 = vrot.slane %v24, %v35
    %v37 = vsub.f32 %v36, %v21
    %v38 = vsub.f32 %v36, %v22
    %v39 = vmax.f32 %v37, 0.0
    %v40 = vmax.f32 %v38, 0.0
    %v41 = vmul.f32 %v31, %v39
    %v42 = vmul.f32 %v32, %v40
    %v43 = vmul.f32 %v41, 6.25
    %v44 = vmul.f32 %v42, 6.25
    %v45 = vmul.f32 %v43, %v43
    %v46 = vmul.f32 %v44, %v44
    %vm47 = vcmask 72704
    %48 = vst.msk [vmem:[#allocation2] sm:$0xff] %vm47, %v45
    %49 = vst.msk [vmem:[#allocation2 + $0x8] sm:$0xff] %vm47, %v46
    %v50 = vld [vmem:[%s1 + $0x1] sm:$0x1]
    %v51 = vld [vmem:[%s2 + $0x1] sm:$0x1]
    %v52 = vlaneseq
    %v53 = vshrl.u32 %v52, 7
    %v54 = vsub.s32 0, %v53
    %v55 = vrot.slane %v50, %v54
    %v56 = vsub.f32 %v21, %v55
    %v57 = vsub.f32 %v22, %v55
    %v58 = vmax.f32 %v56, 0.0
    %v59 = vmax.f32 %v57, 0.0
    %v60 = vlaneseq
    %v61 = vshrl.u32 %v60, 7
    %v62 = vsub.s32 0, %v61
    %v63 = vrot.slane %v51, %v62
    %v64 = vsub.f32 %v63, %v21
    %v65 = vsub.f32 %v63, %v22
    %v66 = vmax.f32 %v64, 0.0
    %v67 = vmax.f32 %v65, 0.0
    %v68 = vmul.f32 %v58, %v66
    %v69 = vmul.f32 %v59, %v67
    %v70 = vmul.f32 %v68, 6.25
    %v71 = vmul.f32 %v69, 6.25
    %v72 = vmul.f32 %v70, %v70
    %v73 = vmul.f32 %v71, %v71
    %76 = vrot.lane.b32.xlu0 %v72, 9
    %v77 = vpop.permute.xlu0 %76
    %78 = vrot.lane.b32.xlu0 %v73, 9
    %v79 = vpop.permute.xlu0 %78
    %vm82 = vcmask 146504
    %83 = vst.msk [vmem:[#allocation2] sm:$0xff] %vm82, %v77
    %84 = vst.msk [vmem:[#allocation2 + $0x8] sm:$0xff] %vm82, %v79
    %v85 = vld [vmem:[%s1 + $0x2] sm:$0x1]
    %v86 = vld [vmem:[%s2 + $0x2] sm:$0x1]
    %v87 = vlaneseq
    %v88 = vshrl.u32 %v87, 7
    %v89 = vsub.s32 0, %v88
    %v90 = vrot.slane %v85, %v89
    %v91 = vsub.f32 %v21, %v90
    %v92 = vsub.f32 %v22, %v90
    %v93 = vmax.f32 %v91, 0.0
    %v94 = vmax.f32 %v92, 0.0
    %v95 = vlaneseq
    %v96 = vshrl.u32 %v95, 7
    %v97 = vsub.s32 0, %v96
    %v98 = vrot.slane %v86, %v97
    %v99 = vsub.f32 %v98, %v21
    %v100 = vsub.f32 %v98, %v22
    %v101 = vmax.f32 %v99, 0.0
    %v102 = vmax.f32 %v100, 0.0
    %v103 = vmul.f32 %v93, %v101
    %v104 = vmul.f32 %v94, %v102
    %v105 = vmul.f32 %v103, 6.25
    %v106 = vmul.f32 %v104, 6.25
    %v107 = vmul.f32 %v105, %v105
    %v108 = vmul.f32 %v106, %v106
    %111 = vrot.lane.b32.xlu0 %v107, 18
    %v112 = vpop.permute.xlu0 %111
    %113 = vrot.lane.b32.xlu0 %v108, 18
    %v114 = vpop.permute.xlu0 %113
    %vm117 = vcmask 220304
    %118 = vst.msk [vmem:[#allocation2] sm:$0xff] %vm117, %v112
    %119 = vst.msk [vmem:[#allocation2 + $0x8] sm:$0xff] %vm117, %v114
    %v120 = vld [vmem:[%s1 + $0x3] sm:$0x1]
    %v121 = vld [vmem:[%s2 + $0x3] sm:$0x1]
    %v122 = vlaneseq
    %v123 = vshrl.u32 %v122, 7
    %v124 = vsub.s32 0, %v123
    %v125 = vrot.slane %v120, %v124
    %v126 = vsub.f32 %v21, %v125
    %v127 = vsub.f32 %v22, %v125
    %v128 = vmax.f32 %v126, 0.0
    %v129 = vmax.f32 %v127, 0.0
    %v130 = vlaneseq
    %v131 = vshrl.u32 %v130, 7
    %v132 = vsub.s32 0, %v131
    %v133 = vrot.slane %v121, %v132
    %v134 = vsub.f32 %v133, %v21
    %v135 = vsub.f32 %v133, %v22
    %v136 = vmax.f32 %v134, 0.0
    %v137 = vmax.f32 %v135, 0.0
    %v138 = vmul.f32 %v128, %v136
    %v139 = vmul.f32 %v129, %v137
    %v140 = vmul.f32 %v138, 6.25
    %v141 = vmul.f32 %v139, 6.25
    %v142 = vmul.f32 %v140, %v140
    %v143 = vmul.f32 %v141, %v141
    %146 = vrot.lane.b32.xlu0 %v142, 27
    %v147 = vpop.permute.xlu0 %146
    %148 = vrot.lane.b32.xlu0 %v143, 27
    %v149 = vpop.permute.xlu0 %148
    %vm152 = vcmask 294104
    %153 = vst.msk [vmem:[#allocation2] sm:$0xff] %vm152, %v147
    %154 = vst.msk [vmem:[#allocation2 + $0x8] sm:$0xff] %vm152, %v149
    %v155 = vld [vmem:[%s1 + $0x4] sm:$0x1]
    %v156 = vld [vmem:[%s2 + $0x4] sm:$0x1]
    %v157 = vlaneseq
    %v158 = vshrl.u32 %v157, 7
    %v159 = vsub.s32 0, %v158
    %v160 = vrot.slane %v155, %v159
    %v161 = vsub.f32 %v21, %v160
    %v162 = vsub.f32 %v22, %v160
    %v163 = vmax.f32 %v161, 0.0
    %v164 = vmax.f32 %v162, 0.0
    %v165 = vlaneseq
    %v166 = vshrl.u32 %v165, 7
    %v167 = vsub.s32 0, %v166
    %v168 = vrot.slane %v156, %v167
    %v169 = vsub.f32 %v168, %v21
    %v170 = vsub.f32 %v168, %v22
    %v171 = vmax.f32 %v169, 0.0
    %v172 = vmax.f32 %v170, 0.0
    %v173 = vmul.f32 %v163, %v171
    %v174 = vmul.f32 %v164, %v172
    %v175 = vmul.f32 %v173, 6.25
    %v176 = vmul.f32 %v174, 6.25
    %v177 = vmul.f32 %v175, %v175
    %v178 = vmul.f32 %v176, %v176
    %181 = vrot.lane.b32.xlu0 %v177, 36
    %v182 = vpop.permute.xlu0 %181
    %183 = vrot.lane.b32.xlu0 %v178, 36
    %v184 = vpop.permute.xlu0 %183
    %vm187 = vcmask 367904
    %188 = vst.msk [vmem:[#allocation2] sm:$0xff] %vm187, %v182
    %189 = vst.msk [vmem:[#allocation2 + $0x8] sm:$0xff] %vm187, %v184
    %v190 = vld [vmem:[%s1 + $0x5] sm:$0x1]
    %v191 = vld [vmem:[%s2 + $0x5] sm:$0x1]
    %v192 = vlaneseq
    %v193 = vshrl.u32 %v192, 7
    %v194 = vsub.s32 0, %v193
    %v195 = vrot.slane %v190, %v194
    %v196 = vsub.f32 %v21, %v195
    %v197 = vsub.f32 %v22, %v195
    %v198 = vmax.f32 %v196, 0.0
    %v199 = vmax.f32 %v197, 0.0
    %v200 = vlaneseq
    %v201 = vshrl.u32 %v200, 7
    %v202 = vsub.s32 0, %v201
    %v203 = vrot.slane %v191, %v202
    %v204 = vsub.f32 %v203, %v21
    %v205 = vsub.f32 %v203, %v22
    %v206 = vmax.f32 %v204, 0.0
    %v207 = vmax.f32 %v205, 0.0
    %v208 = vmul.f32 %v198, %v206
    %v209 = vmul.f32 %v199, %v207
    %v210 = vmul.f32 %v208, 6.25
    %v211 = vmul.f32 %v209, 6.25
    %v212 = vmul.f32 %v210, %v210
    %v213 = vmul.f32 %v211, %v211
    %216 = vrot.lane.b32.xlu0 %v212, 45
    %v217 = vpop.permute.xlu0 %216
    %218 = vrot.lane.b32.xlu0 %v213, 45
    %v219 = vpop.permute.xlu0 %218
    %vm222 = vcmask 441704
    %223 = vst.msk [vmem:[#allocation2] sm:$0xff] %vm222, %v217
    %224 = vst.msk [vmem:[#allocation2 + $0x8] sm:$0xff] %vm222, %v219
    %v225 = vld [vmem:[%s1 + $0x6] sm:$0x1]
    %v226 = vld [vmem:[%s2 + $0x6] sm:$0x1]
    %v227 = vlaneseq
    %v228 = vshrl.u32 %v227, 7
    %v229 = vsub.s32 0, %v228
    %v230 = vrot.slane %v225, %v229
    %v231 = vsub.f32 %v21, %v230
    %v232 = vsub.f32 %v22, %v230
    %v233 = vmax.f32 %v231, 0.0
    %v234 = vmax.f32 %v232, 0.0
    %v235 = vlaneseq
    %v236 = vshrl.u32 %v235, 7
    %v237 = vsub.s32 0, %v236
    %v238 = vrot.slane %v226, %v237
    %v239 = vsub.f32 %v238, %v21
    %v240 = vsub.f32 %v238, %v22
    %v241 = vmax.f32 %v239, 0.0
    %v242 = vmax.f32 %v240, 0.0
    %v243 = vmul.f32 %v233, %v241
    %v244 = vmul.f32 %v234, %v242
    %v245 = vmul.f32 %v243, 6.25
    %v246 = vmul.f32 %v244, 6.25
    %v247 = vmul.f32 %v245, %v245
    %v248 = vmul.f32 %v246, %v246
    %251 = vrot.lane.b32.xlu0 %v247, 54
    %v252 = vpop.permute.xlu0 %251
    %253 = vrot.lane.b32.xlu0 %v248, 54
    %v254 = vpop.permute.xlu0 %253
    %vm257 = vcmask 515504
    %258 = vst.msk [vmem:[#allocation2] sm:$0xff] %vm257, %v252
    %259 = vst.msk [vmem:[#allocation2 + $0x8] sm:$0xff] %vm257, %v254
    %v260 = vld [vmem:[%s1 + $0x7] sm:$0x1]
    %v261 = vld [vmem:[%s2 + $0x7] sm:$0x1]
    %v262 = vlaneseq
    %v263 = vshrl.u32 %v262, 7
    %v264 = vsub.s32 0, %v263
    %v265 = vrot.slane %v260, %v264
    %v266 = vsub.f32 %v21, %v265
    %v267 = vsub.f32 %v22, %v265
    %v268 = vmax.f32 %v266, 0.0
    %v269 = vmax.f32 %v267, 0.0
    %v270 = vlaneseq
    %v271 = vshrl.u32 %v270, 7
    %v272 = vsub.s32 0, %v271
    %v273 = vrot.slane %v261, %v272
    %v274 = vsub.f32 %v273, %v21
    %v275 = vsub.f32 %v273, %v22
    %v276 = vmax.f32 %v274, 0.0
    %v277 = vmax.f32 %v275, 0.0
    %v278 = vmul.f32 %v268, %v276
    %v279 = vmul.f32 %v269, %v277
    %v280 = vmul.f32 %v278, 6.25
    %v281 = vmul.f32 %v279, 6.25
    %v282 = vmul.f32 %v280, %v280
    %v283 = vmul.f32 %v281, %v281
    %286 = vrot.lane.b32.xlu0 %v282, 63
    %v287 = vpop.permute.xlu0 %286
    %288 = vrot.lane.b32.xlu0 %v283, 63
    %v289 = vpop.permute.xlu0 %288
    %vm292 = vcmask 589304
    %293 = vst.msk [vmem:[#allocation2] sm:$0xff] %vm292, %v287
    %294 = vst.msk [vmem:[#allocation2 + $0x8] sm:$0xff] %vm292, %v289
    %v295 = vld [vmem:[#allocation2] sm:$0xff]
    %v296 = vld [vmem:[#allocation2 + $0x8] sm:$0xff]
    %v297 = vld [vmem:[%s3] sm:$0xff]
    %v298 = vld [vmem:[%s3 + $0x8] sm:$0xff]
    %v299 = vld [vmem:[%s3 + $0x10] sm:$0xff]
    %v300 = vld [vmem:[%s3 + $0x18] sm:$0xff]
    %v301 = vld [vmem:[%s3 + $0x20] sm:$0xff]
    %v302 = vld [vmem:[%s3 + $0x28] sm:$0xff]
    %v303 = vld [vmem:[%s3 + $0x30] sm:$0xff]
    %v304 = vld [vmem:[%s3 + $0x38] sm:$0xff]
    %v305 = vld [vmem:[%s3 + $0x40] sm:$0xff]
    %v306 = vld [vmem:[%s4] sm:$0x1]
    %v308 = vlaneseq
    %v309 = vshrl.u32 %v308, 7
    %v310 = vsub.s32 0, %v309
    %v311 = vrot.slane %v306, %v310
    %vm313 = vcmask 588800
    %v315 = vsel %vm313, %v295, 0
    %v318 = vsel %vm313, %v296, 0
    %320 = vmatprep.subr.mxu0 0.0
    %321 = vmatpush1.msra.mxu0 0.0
    %322 = vmatprep.subr.mxu0 0.0
    %323 = vmatpush1.msra.mxu0 0.0
    %324 = vmatprep.subr.mxu0 0.0
    %325 = vmatpush1.msra.mxu0 0.0
    %326 = vmatprep.subr.mxu0 0.0
    %327 = vmatpush1.msra.mxu0 0.0
    %328 = vmatprep.subr.mxu0 0.0
    %329 = vmatpush1.msra.mxu0 0.0
    %330 = vmatprep.subr.mxu0 0.0
    %331 = vmatpush1.msra.mxu0 0.0
    %332 = vmatprep.subr.mxu0 0.0
    %333 = vmatpush1.msra.mxu0 0.0
    %334 = vmatprep.subr.mxu0 0.0
    %335 = vmatpush1.msra.mxu0 %v305
    %336 = vmatprep.subr.mxu0 0.0
    %337 = vmatpush1.msra.mxu0 %v304
    %338 = vmatprep.subr.mxu0 0.0
    %339 = vmatpush1.msra.mxu0 %v303
    %340 = vmatprep.subr.mxu0 0.0
    %341 = vmatpush1.msra.mxu0 %v302
    %342 = vmatprep.subr.mxu0 0.0
    %343 = vmatpush1.msra.mxu0 %v301
    %344 = vmatprep.subr.mxu0 0.0
    %345 = vmatpush1.msra.mxu0 %v300
    %346 = vmatprep.subr.mxu0 0.0
    %347 = vmatpush1.msra.mxu0 %v299
    %348 = vmatprep.subr.mxu0 0.0
    %349 = vmatpush1.msra.mxu0 %v298
    %350 = vmatprep.subr.mxu0 0.0
    %351 = vmatpush1.msra.mxu0 %v297
    %352 = vmatprep.subr.mxu0 0.0
    %353 = vmatpush2.msra.mxu0 0.0
    %354 = vmatprep.subr.mxu0 0.0
    %355 = vmatpush2.msra.mxu0 0.0
    %356 = vmatprep.subr.mxu0 0.0
    %357 = vmatpush2.msra.mxu0 0.0
    %358 = vmatprep.subr.mxu0 0.0
    %359 = vmatpush2.msra.mxu0 0.0
    %360 = vmatprep.subr.mxu0 0.0
    %361 = vmatpush2.msra.mxu0 0.0
    %362 = vmatprep.subr.mxu0 0.0
    %363 = vmatpush2.msra.mxu0 0.0
    %364 = vmatprep.subr.mxu0 0.0
    %365 = vmatpush2.msra.mxu0 0.0
    %366 = vmatprep.subr.mxu0 0.0
    %367 = vmatpush2.msra.mxu0 0.0
    %368 = vmatprep.subr.mxu0 0.0
    %369 = vmatpush2.msra.mxu0 0.0
    %370 = vmatprep.subr.mxu0 0.0
    %371 = vmatpush2.msra.mxu0 0.0
    %372 = vmatprep.subr.mxu0 0.0
    %373 = vmatpush2.msra.mxu0 0.0
    %374 = vmatprep.subr.mxu0 0.0
    %375 = vmatpush2.msra.mxu0 0.0
    %376 = vmatprep.subr.mxu0 0.0
    %377 = vmatpush2.msra.mxu0 0.0
    %378 = vmatprep.subr.mxu0 0.0
    %379 = vmatpush2.msra.mxu0 0.0
    %380 = vmatprep.subr.mxu0 0.0
    %381 = vmatpush2.msra.mxu0 0.0
    %382 = vmatprep.subr.mxu0 0.0
    %383 = vmatpush2.msra.mxu0 0.0
    %384 = vmatprep.mubr.f32.mxu0 0.0
    %385 = vmatmul.mubr.f32.gmra.mxu0 %v315
    %v386 = vpop.f32.mrf.mxu0
    %v387 = vadd.f32 %v311, %v386
    %v388 = vpop.f32.mrf.mxu0
    %389 = vmatprep.mubr.f32.mxu0 0.0
    %390 = vmatmul.mubr.f32.gmra.mxu0 %v318
    %v391 = vpop.f32.mrf.mxu0
    %v392 = vadd.f32 %v311, %v391
    %v393 = vpop.f32.mrf.mxu0
    %394 = vdwg.mxu0
    %vm395 = vcmask 261120
    %396 = vst.msk [vmem:[#allocation3] sm:$0xff] %vm395, %v387
    %397 = vst.msk [vmem:[#allocation3 + $0x8] sm:$0xff] %vm395, %v392
    // Predicated region
    $region22: #{tpu_custom_call.1} parent=1 // pred_check
      _
    $region23: #{tpu_custom_call.1} parent=1 // pred_check_branch
      %399 = sbr.rel (0) target = $region25
    $region24: #{tpu_custom_call.1} parent=1 // pred_region
      %s401 = ssub.s32 256, 256
      %402 = vsyncadd [#allocation4], %s401
      %s403 = sshll.u32 [#allocation3], 4
      %s404 = int_to_ptr.vmem [resolvable:$true] %s403
      %409 = dma.vmem_to_hbm [thread:$0]  %s404, 256, %s5, [#allocation4], 128, 128, 8
    $region25: #{tpu_custom_call.1} parent=1 // pred_fallthru
      _
    // Predicated region
    $region26: #{tpu_custom_call.1} parent=1 // pred_check
      _
    $region27: #{tpu_custom_call.1} parent=1 // pred_check_branch
      %411 = sbr.rel (0) target = $region29
    $region28: #{tpu_custom_call.1} parent=1 // pred_region
      %412 = dma.done [#allocation4], 256
    $region29: #{tpu_custom_call.1} parent=1 // pred_fallthru
      _
    %413 = vsyncpa [#allocation4], 1

</llo_original>
